<compile_context>
chip_gen: v5e
topology: v5e:2x2
jax: 0.10.0
libtpu: 0.0.40
codegen_flags: <defaults>
</compile_context>

<pallas_src>
import numpy as np
import jax
import jax.numpy as jnp
from jax.experimental import pallas as pl
from jax.experimental.pallas import tpu as pltpu


# ----------------------------------------------------------------------------
# Pallas kernel: elementwise BN(scale,bias) -> ReLU -> one (O, C_in) matmul.
# ----------------------------------------------------------------------------
def _make_condense_kernel(batch_block):
    nb = int(batch_block)

    def kernel(x_ref, s_ref, b_ref, w_ref, o_ref):
        # x_ref: (Nb, C_in, T)  activation tile (T spatial columns, lane axis)
        # s_ref: (C_in, 1)      per-original-channel BN scale
        # b_ref: (C_in, 1)      per-original-channel BN bias
        # w_ref: (O, C_in)      gather + grouped-conv + shuffle folded weight
        # o_ref: (Nb, O, T)
        s = s_ref[...]
        b = b_ref[...]
        w = w_ref[...]                      # pre-cast to bf16 in wrapper if used
        for n in range(nb):                 # static unroll (nb <= 16)
            x = x_ref[n]                    # (C_in, T) f32
            y = jnp.maximum(x * s + b, 0.0)
            if w.dtype != jnp.float32:
                y = y.astype(w.dtype)       # only the activation cast in-kernel
            o_ref[n] = jnp.dot(w, y, preferred_element_type=jnp.float32)

    return kernel


# ----------------------------------------------------------------------------
# Generation-aware VMEM budgeting and blocking choice.
# ----------------------------------------------------------------------------
def _vmem_caps():
    """(tile_budget_bytes, vmem_limit_bytes) derived from the actual chip."""
    try:
        cap = int(pltpu.get_tpu_info().vmem_capacity_bytes)
    except Exception:
        cap = 64 << 20                       # conservative (v7x per-TC size)
    tile_budget = max(8 << 20, int(cap * 0.55))
    vmem_limit = max(32 << 20, min(int(cap * 0.85), 112 << 20))
    return tile_budget, vmem_limit


def _choose_blocking(N, C_in, O, HW, *, tile_budget, use_bf16,
                     tile_hw=None, batch_block=None,
                     max_batch_block=16, target_bytes=2 << 20):
    """Pick (tile_hw, batch_block): spatial lane tile and images per grid step."""
    # per spatial column (per image): 2x double-buffered in + out, f32
    # intermediate, optional bf16 copy of the intermediate.
    per_col = 4 * (3 * C_in + 2 * O) + (2 * C_in if use_bf16 else 0)
    const = 8 * (O * C_in + 2 * C_in) + (256 << 10)     # weights + headroom
    budget = max(tile_budget - const, 2 << 20)

    auto_tile = tile_hw is None
    if auto_tile:
        max_cols = max(128, (budget // per_col) // 128 * 128)
        if HW <= max_cols:
            tile_hw = HW                       # full extent (always layout-legal)
        else:
            tile_hw = min(max_cols, (HW // 128) * 128)

    auto_nb = batch_block is None
    if auto_nb:
        nb = 1
        step_bytes = per_col * tile_hw
        if tile_hw >= HW and step_bytes < target_bytes and N > 1:
            nb = min(N, max_batch_block,
                     max(1, budget // step_bytes),
                     -(-target_bytes // step_bytes))
        batch_block = max(1, int(nb))

    # Guarantee >=2 grid blocks when possible so both v7x TensorCores get work
    # (costs at most one extra ~0.35us step on single-TC chips).
    if auto_tile and auto_nb:
        n_blocks = (-(-N // batch_block)) * (-(-HW // tile_hw))
        if n_blocks < 2:
            if N > 1:
                batch_block = max(1, (N + 1) // 2)
            elif HW > 128:
                tile_hw = ((HW - 1) // 128) * 128

    return int(tile_hw), int(batch_block)


# ----------------------------------------------------------------------------
# pallas_call wrapper
# ----------------------------------------------------------------------------
def _fused_condense_conv(x3, scale_o, bias_o, w_big, *, tile_hw, batch_block,
                         vmem_limit):
    """x3: (N, C_in, HW) f32 -> (N, O, HW) f32."""
    N, C_in, HW = x3.shape
    O = w_big.shape[0]
    grid = (-(-N // batch_block), -(-HW // tile_hw))
    kernel = _make_condense_kernel(batch_block)

    flops = 2 * N * HW * O * C_in + 3 * N * C_in * HW
    bytes_accessed = int(4 * (N * C_in * HW + N * O * HW + 2 * C_in)
                         + O * C_in * w_big.dtype.itemsize)

    return pl.pallas_call(
        kernel,
        out_shape=jax.ShapeDtypeStruct((N, O, HW), jnp.float32),
        grid_spec=pltpu.PrefetchScalarGridSpec(
            num_scalar_prefetch=0,
            grid=grid,
            in_specs=[
                pl.BlockSpec((batch_block, C_in, tile_hw),
                             lambda n, m: (n, 0, m)),
                # scale / bias / weight: grid-invariant -> resident in VMEM
                pl.BlockSpec((C_in, 1), lambda n, m: (0, 0)),
                pl.BlockSpec((C_in, 1), lambda n, m: (0, 0)),
                pl.BlockSpec((O, C_in), lambda n, m: (0, 0)),
            ],
            out_specs=pl.BlockSpec((batch_block, O, tile_hw),
                                   lambda n, m: (n, 0, m)),
        ),
        compiler_params=pltpu.CompilerParams(
            dimension_semantics=("parallel", "parallel"),
            vmem_limit_bytes=int(vmem_limit)),
        cost_estimate=pl.CostEstimate(
            flops=int(flops), transcendentals=0,
            bytes_accessed=bytes_accessed),
    )(x3, scale_o, bias_o, w_big)


# ----------------------------------------------------------------------------
# Full CondensingConv.forward
# ----------------------------------------------------------------------------
def condensing_conv_forward(x, index, gamma, beta, rmean, rvar, conv_w, groups,
                            eps=1e-5, tile_hw=None, batch_block=None,
                            use_bf16_matmul=False):
    N, C_in, H, W = x.shape
    G = groups
    C_sel = index.shape[0]
    Cg = C_sel // G
    O = conv_w.shape[0]
    Og = O // G
    HW = H * W

    # ---- one-time parameter folding (would normally happen at load time) ----
    scale = gamma / jnp.sqrt(rvar + eps)                        # (C_sel,)
    bias = beta - rmean * scale                                 # (C_sel,)
    # BN params were copied per *original* channel in CondensingConv.__init__,
    # so BN + ReLU commute with the channel gather: fold them to per-original-
    # channel vectors (unselected channels get 0 -> contribute nothing).
    scale_o = jnp.zeros((C_in,), jnp.float32).at[index].set(scale).reshape(C_in, 1)
    bias_o = jnp.zeros((C_in,), jnp.float32).at[index].set(bias).reshape(C_in, 1)

    # grouped 1x1 conv as a block-diagonal (O, C_sel) matrix ...
    w2d = conv_w[:, :, 0, 0]                                    # (O, Cg)
    rows = jnp.arange(O)
    cols = (rows // Og)[:, None] * Cg + jnp.arange(Cg)[None, :] # (O, Cg)
    wbd = jnp.zeros((O, C_sel), jnp.float32).at[rows[:, None], cols].set(w2d)
    # ... ShuffleLayer folded as a static row permutation ...
    w_shuf = wbd[(rows % G) * Og + rows // G]                   # (O, C_sel)
    # ... and the channel gather folded as a column scatter-add -> (O, C_in).
    w_big = jnp.zeros((O, C_in), jnp.float32).at[:, index].add(w_shuf)
    if use_bf16_matmul:
        w_big = w_big.astype(jnp.bfloat16)    # pre-cast once; stays resident

    tile_budget, vmem_limit = _vmem_caps()
    tile_hw, batch_block = _choose_blocking(
        N, C_in, O, HW, tile_budget=tile_budget, use_bf16=use_bf16_matmul,
        tile_hw=tile_hw, batch_block=batch_block)

    # ---- Pallas kernel on NCHW-native (N, C, H*W) slabs (free reshapes) ----
    x3 = x.reshape(N, C_in, HW)
    out3 = _fused_condense_conv(x3, scale_o, bias_o, w_big,
                                tile_hw=tile_hw, batch_block=batch_block,
                                vmem_limit=vmem_limit)
    return out3.reshape(N, O, H, W)


# ----------------------------------------------------------------------------
# Pure-JAX reference (mirrors the PyTorch forward) for the correctness check
# ----------------------------------------------------------------------------
def reference_forward(x, index, gamma, beta, rmean, rvar, conv_w, groups, eps=1e-5):
    G = groups
    xs = x[:, index, :, :]
    xn = (xs - rmean[None, :, None, None]) / jnp.sqrt(rvar[None, :, None, None] + eps)
    xn = xn * gamma[None, :, None, None] + beta[None, :, None, None]
    xr = jnp.maximum(xn, 0.0)
    N, C, H, W = xr.shape
    Cg = C // G
    O = conv_w.shape[0]
    Og = O // G
    outs = []
    for g in range(G):
        xg_ = xr[:, g * Cg:(g + 1) * Cg]                         # (N, Cg, H, W)
        wg_ = conv_w[g * Og:(g + 1) * Og, :, 0, 0]               # (Og, Cg)
        outs.append(jnp.einsum('oc,nchw->nohw', wg_, xg_,
                               preferred_element_type=jnp.float32))
    out = jnp.concatenate(outs, axis=1)                          # (N, O, H, W)
    # ShuffleLayer
    out = out.reshape(N, G, Og, H, W).transpose(0, 2, 1, 3, 4).reshape(N, O, H, W)
    return out


# ----------------------------------------------------------------------------
# Deterministic parameter construction (replicates CondensingConv.__init__)
# ----------------------------------------------------------------------------
def build_condensed_params(key, *, in_ch_orig, out_ch, groups, condense_factor):
    in_ch_cond = in_ch_orig * groups // condense_factor
    Cg = in_ch_cond // groups
    Og = out_ch // groups

    ks = jax.random.split(key, 5)
    model_conv_w = jax.random.normal(ks[0], (out_ch, in_ch_orig, 1, 1), jnp.float32) * 0.1
    model_norm_w = jax.random.normal(ks[1], (in_ch_orig,), jnp.float32) * 0.1 + 1.0
    model_norm_b = jax.random.normal(ks[2], (in_ch_orig,), jnp.float32) * 0.1
    model_run_mean = jax.random.normal(ks[3], (in_ch_orig,), jnp.float32) * 0.1
    model_run_var = jax.random.uniform(ks[4], (in_ch_orig,), jnp.float32, 0.5, 1.5)

    # deterministic synthetic learned-group-conv mask: exactly Cg surviving
    # input channels per group (mask[i, j] == 1 means channel j kept by group i).
    mask = np.zeros((groups, in_ch_orig), dtype=np.int32)
    for i in range(groups):
        kept = [(2 * i + 1 + 3 * t) % in_ch_orig for t in range(Cg)]
        mask[i, sorted(set(kept))[:Cg]] = 1
        if mask[i].sum() < Cg:                       # guarantee exactly Cg ones
            for j in range(in_ch_orig):
                if mask[i].sum() == Cg:
                    break
                mask[i, j] = 1

    mcw = np.asarray(model_conv_w)
    mnw, mnb = np.asarray(model_norm_w), np.asarray(model_norm_b)
    mrm, mrv = np.asarray(model_run_mean), np.asarray(model_run_var)

    index = np.zeros((in_ch_cond,), dtype=np.int32)
    cond_w = np.zeros((out_ch, Cg, 1, 1), dtype=np.float32)
    gamma = np.zeros((in_ch_cond,), dtype=np.float32)
    beta = np.zeros((in_ch_cond,), dtype=np.float32)
    rmean = np.zeros((in_ch_cond,), dtype=np.float32)
    rvar = np.ones((in_ch_cond,), dtype=np.float32)

    idx = 0
    for i in range(groups):
        for j in range(in_ch_orig):
            if idx < (in_ch_cond // groups) * (i + 1) and mask[i, j] == 1:
                for k in range(out_ch // groups):
                    idx_i = int(k + i * Og)
                    idx_j = idx % Cg
                    cond_w[idx_i, idx_j, :, :] = mcw[int(i + k * groups), j, :, :]
                    gamma[idx] = mnw[j]
                    beta[idx] = mnb[j]
                    rmean[idx] = mrm[j]
                    rvar[idx] = mrv[j]
                index[idx] = j
                idx += 1

    return (jnp.asarray(index), jnp.asarray(gamma), jnp.asarray(beta),
            jnp.asarray(rmean), jnp.asarray(rvar), jnp.asarray(cond_w))


if __name__ == "__main__":
    configs = [
        # main config: HW=256 lane-aligned, auto blocking (>=2 grid blocks)
        dict(N=2, H=16, W=16, in_ch=8, out_ch=8, groups=2, cf=4,
             tile=None, nb=None),
        # HW=169 not a multiple of 128 with an explicit 128-lane tile
        # (exercises the masked tail block); Cg=3 / Og=4 not 8/128 multiples.
        dict(N=2, H=13, W=13, in_ch=12, out_ch=12, groups=3, cf=4,
             tile=128, nb=None),
        # small-HW layer: exercises batch blocking (2 images per grid step),
        # duplicate index entries and never-selected input channels.
        dict(N=4, H=7, W=7, in_ch=16, out_ch=16, groups=4, cf=4,
             tile=None, nb=None),
    ]

    key = jax.random.PRNGKey(0)
    for cfg in configs:
        key, kx, kp = jax.random.split(key, 3)
        index, gamma, beta, rmean, rvar, cond_w = build_condensed_params(
            kp, in_ch_orig=cfg["in_ch"], out_ch=cfg["out_ch"],
            groups=cfg["groups"], condense_factor=cfg["cf"])
        x = jax.random.normal(
            kx, (cfg["N"], cfg["in_ch"], cfg["H"], cfg["W"]), jnp.float32)

        out = jax.block_until_ready(condensing_conv_forward(
            x, index, gamma, beta, rmean, rvar, cond_w, cfg["groups"],
            tile_hw=cfg["tile"], batch_block=cfg["nb"]))
        ref = jax.block_until_ready(reference_forward(
            x, index, gamma, beta, rmean, rvar, cond_w, cfg["groups"]))

        assert out.shape == (cfg["N"], cfg["out_ch"], cfg["H"], cfg["W"]), out.shape
        np.testing.assert_allclose(np.asarray(out), np.asarray(ref),
                                   rtol=1e-3, atol=1e-3)

    print("KERNEL_OK")
</pallas_src>

<mosaic_0001>
module attributes {stable_mosaic.version = 11 : i64} {
  func.func @kernel(%arg0: i32, %arg1: i32, %arg2: memref<1x8x256xf32, #tpu.memory_space<vmem>>, %arg3: memref<8x1xf32, #tpu.memory_space<vmem>>, %arg4: memref<8x1xf32, #tpu.memory_space<vmem>>, %arg5: memref<8x8xf32, #tpu.memory_space<vmem>>, %arg6: memref<1x8x256xf32, #tpu.memory_space<vmem>>) attributes {dimension_semantics = [#tpu.dimension_semantics<parallel>, #tpu.dimension_semantics<parallel>], iteration_bounds = array<i64: 2, 1>, scalar_prefetch = 0 : i64, scratch_operands = 0 : i64, tpu.core_type = #tpu.core_type<tc>, window_params = [{transform_indices = @transform_0, window_bounds = array<i64: 1, 8, 256>}, {pipeline_mode = #tpu.pipeline_mode<synchronous>, transform_indices = @transform_1, window_bounds = array<i64: 8, 1>}, {pipeline_mode = #tpu.pipeline_mode<synchronous>, transform_indices = @transform_2, window_bounds = array<i64: 8, 1>}, {pipeline_mode = #tpu.pipeline_mode<synchronous>, transform_indices = @transform_3, window_bounds = array<i64: 8, 8>}, {transform_indices = @transform_4, window_bounds = array<i64: 1, 8, 256>}]} {
    %c0 = arith.constant 0 : index
    %c0_0 = arith.constant 0 : index
    %0 = vector.load %arg3[%c0, %c0_0] : memref<8x1xf32, #tpu.memory_space<vmem>>, vector<8x1xf32>
    %c0_1 = arith.constant 0 : index
    %c0_2 = arith.constant 0 : index
    %1 = vector.load %arg4[%c0_1, %c0_2] : memref<8x1xf32, #tpu.memory_space<vmem>>, vector<8x1xf32>
    %c0_3 = arith.constant 0 : index
    %c0_4 = arith.constant 0 : index
    %2 = vector.load %arg5[%c0_3, %c0_4] : memref<8x8xf32, #tpu.memory_space<vmem>>, vector<8x8xf32>
    %c0_5 = arith.constant 0 : index
    %c0_6 = arith.constant 0 : index
    %c0_7 = arith.constant 0 : index
    %3 = vector.load %arg2[%c0_5, %c0_6, %c0_7] : memref<1x8x256xf32, #tpu.memory_space<vmem>>, vector<1x8x256xf32>
    %4 = vector.shape_cast %3 : vector<1x8x256xf32> to vector<8x256xf32>
    %5 = vector.broadcast %0 : vector<8x1xf32> to vector<8x256xf32>
    %6 = arith.mulf %4, %5 : vector<8x256xf32>
    %7 = vector.broadcast %1 : vector<8x1xf32> to vector<8x256xf32>
    %8 = arith.addf %6, %7 : vector<8x256xf32>
    %cst = arith.constant 0.000000e+00 : f32
    %9 = vector.broadcast %cst : f32 to vector<8x256xf32>
    %10 = arith.maximumf %8, %9 : vector<8x256xf32>
    %cst_8 = arith.constant dense<0.000000e+00> : vector<8x256xf32>
    %11 = tpu.matmul %2, %10, %cst_8 {dimension_numbers = #tpu.dot_dimension_numbers<[1], [0], [0], [1], [0, 0, 1, 1], [], []>} : vector<8x8xf32>, vector<8x256xf32>, vector<8x256xf32> -> vector<8x256xf32>
    %c0_9 = arith.constant 0 : index
    %c0_10 = arith.constant 0 : index
    %c0_11 = arith.constant 0 : index
    %12 = vector.load %arg6[%c0_9, %c0_10, %c0_11] : memref<1x8x256xf32, #tpu.memory_space<vmem>>, vector<1x8x256xf32>
    %13 = vector.shape_cast %12 : vector<1x8x256xf32> to vector<8x256xf32>
    %14 = vector.shape_cast %11 : vector<8x256xf32> to vector<1x8x256xf32>
    tpu.vector_store %arg6[%c0_9, %c0_10, %c0_11], %14 {strides = array<i32>} : memref<1x8x256xf32, #tpu.memory_space<vmem>>, vector<1x8x256xf32>,
    return
  }
  func.func @transform_0(%arg0: i32, %arg1: i32) -> (i32, i32, i32) {
    %c0_i32 = arith.constant 0 : i32
    %c0_i32_0 = arith.constant 0 : i32
    return %arg0, %c0_i32, %arg1 : i32, i32, i32
  }
  func.func @transform_1(%arg0: i32, %arg1: i32) -> (i32, i32) {
    %c0_i32 = arith.constant 0 : i32
    %c0_i32_0 = arith.constant 0 : i32
    %c0_i32_1 = arith.constant 0 : i32
    return %c0_i32, %c0_i32_0 : i32, i32
  }
  func.func @transform_2(%arg0: i32, %arg1: i32) -> (i32, i32) {
    %c0_i32 = arith.constant 0 : i32
    %c0_i32_0 = arith.constant 0 : i32
    %c0_i32_1 = arith.constant 0 : i32
    return %c0_i32, %c0_i32_0 : i32, i32
  }
  func.func @transform_3(%arg0: i32, %arg1: i32) -> (i32, i32) {
    %c0_i32 = arith.constant 0 : i32
    %c0_i32_0 = arith.constant 0 : i32
    %c0_i32_1 = arith.constant 0 : i32
    return %c0_i32, %c0_i32_0 : i32, i32
  }
  func.func @transform_4(%arg0: i32, %arg1: i32) -> (i32, i32, i32) {
    %c0_i32 = arith.constant 0 : i32
    %c0_i32_0 = arith.constant 0 : i32
    return %arg0, %c0_i32, %arg1 : i32, i32, i32
  }
}

</mosaic_0001>

<llo_original>
// kernel: tpu_custom_call.1
$region0: #{tpu_custom_call.1}
  #allocation0 [shape = 'u32[]', space=smem, size = 0x4, offset = 0x4, fixed_abs, tag = 'smem constant byte address 0x4 - core index']
  #allocation1 [shape = 'u32[72,128]{1,0:T(1,128)}', space=vmem, size = 0x9000, scoped, tag = 'internal scratch']
  %s0 = inlined_call_operand.hbm [shape: f32[2,8,256], index: 0, kind: input, shape index: {}]
  %s1 = inlined_call_operand.vmem [shape: f32[8,1], index: 1, kind: input, shape index: {}]
  %s2 = inlined_call_operand.vmem [shape: f32[8,1], index: 2, kind: input, shape index: {}]
  %s3 = inlined_call_operand.vmem [shape: f32[8,8], index: 3, kind: input, shape index: {}]
  %s4 = inlined_call_operand.hbm [shape: f32[2,8,256], index: 4, kind: output, shape index: {}]
  %s5 = sld [smem:[#allocation0]]
  $region53: #{tpu_custom_call.1} parent=0
    _
  %s7 = ssub.s32 1, %s5
  %s8 = scalar_select 0, %s7, %s5
  $region1: #{tpu_custom_call.1} parent=0
    #allocation2 [shape = 'u8[16384]{0}', space=vmem, size = 0x4000, scoped, tag = 'input window, operand 0']
    #allocation3 [shape = 's32[2]{0}', space=sflag, size = 0x8, scoped, tag = 'scoped memory for tpu_custom_call.1']
    #allocation4 [shape = 's32[2]{0}', space=sflag, size = 0x8, scoped, tag = 'scoped memory for tpu_custom_call.1']
    #allocation5 [shape = 'u8[16384]{0}', space=vmem, size = 0x4000, scoped, tag = 'output window, operand 0']
    %9 = vsyncpa [#allocation3], 0
    %s10 = scalar_lea.sflag [#allocation3], 1
    %11 = vsyncpa %s10, 0
    %12 = vsyncpa [#allocation4], 0
    %s13 = scalar_lea.sflag [#allocation4], 1
    %14 = vsyncpa %s13, 0
    loop: start=0, step=1, limit=4
    $region2: #{tpu_custom_call.1} parent=1 // loop_pre_header
      _
    $region3: #{tpu_custom_call.1} parent=1 // loop_header
      %s16 = sphi 0, %s20
      %p17 = scmp.ge.s32.totalorder %s16, 4
      %s23 = sphi 0, %s35
      %s24 = sphi 0, %s31
      %s25 = sphi 0, %s23
      %s26 = sphi 0, %s24
      %s27 = sphi 0, %s25
      %s28 = sphi 0, %s26
      %s40 = sphi 0, %s42
      %s43 = sphi 0, %s40
      %s44 = sphi 0, %s43
      %s60 = sphi 0, %s44
      %s64 = sphi 0, %s64
      %s66 = sphi 0, %s64
      %s67 = sphi 0, %s66
      %s81 = sphi 0, %s67
      %s85 = sphi 0, %s85
      %s87 = sphi 0, %s85
      %s88 = sphi 0, %s87
      %s102 = sphi 0, %s88
      %s106 = sphi 0, %s106
      %s108 = sphi 0, %s106
      %s109 = sphi 0, %s108
      %s123 = sphi 0, %s109
      %s131 = sphi 0, %s133
      %s134 = sphi 0, %s131
      %s135 = sphi 0, %s134
      %s151 = sphi 0, %s135
    $region4: #{tpu_custom_call.1} parent=1 // loop_header_branch
      %19 = sbr.rel (%p17) target = $region8
    $region5: #{tpu_custom_call.1} parent=1 // loop_body
      %s21 = ssub.s32 %s16, 1
      %s22 = ssub.s32 %s16, 2
      %s29 = sadd.s32 1, %s24
      %p30 = scmp.ge.s32.totalorder %s29, 1
      %s31 = scalar_select %p30, 0, %s29
      %s32 = sadd.s32 1, %s23
      %s33 = scalar_select %p30, %s32, %s23
      %p34 = scmp.ge.s32.totalorder %s33, 2
      %s35 = scalar_select %p34, 0, %s33
      %s36 = ssub.s32 %s23, %s35
      %s37 = ssub.s32 %s24, %s31
      %s38 = sor.u32 %s36, %s37
      %p39 = scmp.eq.s32.totalorder %s38, 0
      %s41 = sadd.s32 %s40, 1
      %s42 = scalar_select %p39, %s40, %s41
      %p45 = pneg %p39
      %p46 = scmp.eq.s32.totalorder %s16, 1
      %p47 = por %p45, %p46
      %p48 = scmp.ne.s32.totalorder %s40, %s43
      %p49 = scmp.eq.s32.totalorder %s16, 0
      %p50 = por %p48, %p49
      %p51 = scmp.ne.s32.totalorder %s40, %s43
      %p52 = scmp.eq.s32.totalorder %s21, 1
      %p53 = por %p51, %p52
      %p54 = scmp.ne.s32.totalorder %s43, %s44
      %p55 = scmp.eq.s32.totalorder %s21, 0
      %p56 = por %p54, %p55
      %p57 = scmp.ne.s32.totalorder %s43, %s44
      %p58 = scmp.eq.s32.totalorder %s22, 1
      %p59 = por %p57, %p58
      %p61 = scmp.ne.s32.totalorder %s44, %s60
      %p62 = scmp.eq.s32.totalorder %s22, 0
      %p63 = por %p61, %p62
      %s65 = sadd.s32 %s64, 1
      %p68 = scmp.eq.s32.totalorder %s16, 1
      %p69 = scmp.ne.s32.totalorder %s64, %s66
      %p70 = scmp.eq.s32.totalorder %s16, 0
      %p71 = por %p69, %p70
      %p72 = scmp.ne.s32.totalorder %s64, %s66
      %p73 = scmp.eq.s32.totalorder %s21, 1
      %p74 = por %p72, %p73
      %p75 = scmp.ne.s32.totalorder %s66, %s67
      %p76 = scmp.eq.s32.totalorder %s21, 0
      %p77 = por %p75, %p76
      %p78 = scmp.ne.s32.totalorder %s66, %s67
      %p79 = scmp.eq.s32.totalorder %s22, 1
      %p80 = por %p78, %p79
      %p82 = scmp.ne.s32.totalorder %s67, %s81
      %p83 = scmp.eq.s32.totalorder %s22, 0
      %p84 = por %p82, %p83
      %s86 = sadd.s32 %s85, 1
      %p89 = scmp.eq.s32.totalorder %s16, 1
      %p90 = scmp.ne.s32.totalorder %s85, %s87
      %p91 = scmp.eq.s32.totalorder %s16, 0
      %p92 = por %p90, %p91
      %p93 = scmp.ne.s32.totalorder %s85, %s87
      %p94 = scmp.eq.s32.totalorder %s21, 1
      %p95 = por %p93, %p94
      %p96 = scmp.ne.s32.totalorder %s87, %s88
      %p97 = scmp.eq.s32.totalorder %s21, 0
      %p98 = por %p96, %p97
      %p99 = scmp.ne.s32.totalorder %s87, %s88
      %p100 = scmp.eq.s32.totalorder %s22, 1
      %p101 = por %p99, %p100
      %p103 = scmp.ne.s32.totalorder %s88, %s102
      %p104 = scmp.eq.s32.totalorder %s22, 0
      %p105 = por %p103, %p104
      %s107 = sadd.s32 %s106, 1
      %p110 = scmp.eq.s32.totalorder %s16, 1
      %p111 = scmp.ne.s32.totalorder %s106, %s108
      %p112 = scmp.eq.s32.totalorder %s16, 0
      %p113 = por %p111, %p112
      %p114 = scmp.ne.s32.totalorder %s106, %s108
      %p115 = scmp.eq.s32.totalorder %s21, 1
      %p116 = por %p114, %p115
      %p117 = scmp.ne.s32.totalorder %s108, %s109
      %p118 = scmp.eq.s32.totalorder %s21, 0
      %p119 = por %p117, %p118
      %p120 = scmp.ne.s32.totalorder %s108, %s109
      %p121 = scmp.eq.s32.totalorder %s22, 1
      %p122 = por %p120, %p121
      %p124 = scmp.ne.s32.totalorder %s109, %s123
      %p125 = scmp.eq.s32.totalorder %s22, 0
      %p126 = por %p124, %p125
      %s127 = ssub.s32 %s23, %s35
      %s128 = ssub.s32 %s24, %s31
      %s129 = sor.u32 %s127, %s128
      %p130 = scmp.eq.s32.totalorder %s129, 0
      %s132 = sadd.s32 %s131, 1
      %s133 = scalar_select %p130, %s131, %s132
      %p136 = pneg %p130
      %p137 = scmp.eq.s32.totalorder %s16, 1
      %p138 = por %p136, %p137
      %p139 = scmp.ne.s32.totalorder %s131, %s134
      %p140 = scmp.eq.s32.totalorder %s16, 0
      %p141 = por %p139, %p140
      %p142 = scmp.ne.s32.totalorder %s131, %s134
      %p143 = scmp.eq.s32.totalorder %s21, 1
      %p144 = por %p142, %p143
      %p145 = scmp.ne.s32.totalorder %s134, %s135
      %p146 = scmp.eq.s32.totalorder %s21, 0
      %p147 = por %p145, %p146
      %p148 = scmp.ne.s32.totalorder %s134, %s135
      %p149 = scmp.eq.s32.totalorder %s22, 1
      %p150 = por %p148, %p149
      %p152 = scmp.ne.s32.totalorder %s135, %s151
      %p153 = scmp.eq.s32.totalorder %s22, 0
      %p154 = por %p152, %p153
      %p155 = scmp.le.s32.totalorder 1, %s16
      %p156 = scmp.lt.s32.totalorder %s16, 3
      %p157 = pnand %p155, %p156
      %p158 = pneg %p157
      // Predicated region
      $region9: #{tpu_custom_call.1} parent=5 // pred_check
        _
      $region10: #{tpu_custom_call.1} parent=5 // pred_check_branch
        %160 = sbr.rel (%p157) target = $region12
      $region11: #{tpu_custom_call.1} parent=5 // pred_region
        %s161 = ssub.s32 %s16, 1
        // Predicated region
        $region13: #{tpu_custom_call.1} parent=11 // pred_check
          %p162 = pneg %p77
        $region14: #{tpu_custom_call.1} parent=11 // pred_check_branch
          %164 = sbr.rel (%p162) target = $region16
        $region15: #{tpu_custom_call.1} parent=11 // pred_region
          _
        $region16: #{tpu_custom_call.1} parent=11 // pred_fallthru
          _
        // Predicated region
        $region17: #{tpu_custom_call.1} parent=11 // pred_check
          %p165 = pneg %p98
        $region18: #{tpu_custom_call.1} parent=11 // pred_check_branch
          %167 = sbr.rel (%p165) target = $region20
        $region19: #{tpu_custom_call.1} parent=11 // pred_region
          _
        $region20: #{tpu_custom_call.1} parent=11 // pred_fallthru
          _
        // Predicated region
        $region21: #{tpu_custom_call.1} parent=11 // pred_check
          %p168 = pneg %p119
        $region22: #{tpu_custom_call.1} parent=11 // pred_check_branch
          %170 = sbr.rel (%p168) target = $region24
        $region23: #{tpu_custom_call.1} parent=11 // pred_region
          _
        $region24: #{tpu_custom_call.1} parent=11 // pred_fallthru
          _
      $region12: #{tpu_custom_call.1} parent=5 // pred_fallthru
        _
      %p171 = scmp.lt.s32.totalorder %s16, 2
      // Predicated region
      $region25: #{tpu_custom_call.1} parent=5 // pred_check
        %p172 = pneg %p171
      $region26: #{tpu_custom_call.1} parent=5 // pred_check_branch
        %174 = sbr.rel (%p172) target = $region28
      $region27: #{tpu_custom_call.1} parent=5 // pred_region
        // Predicated region
        $region29: #{tpu_custom_call.1} parent=27 // pred_check
          %p175 = pneg %p50
        $region30: #{tpu_custom_call.1} parent=27 // pred_check_branch
          %177 = sbr.rel (%p175) target = $region32
        $region31: #{tpu_custom_call.1} parent=27 // pred_region
          %s178 = sand.u32 %s40, 1
          %s179 = scalar_lea.sflag [#allocation3], %s178
          %s180 = sand.u32 %s40, 1
          %s181 = smul.addr %s180, 16
          %s182 = scalar_lea.vmem [#allocation2], %s181
          %s183 = smul.u32 2, %s24
          %185 = vsyncadd %s179, 0
          %s186 = smul.addr %s23, 2
          %s187 = sadd.s32 %s183, %s186
          %s188 = smul.addr %s187, 8
          %s189 = scalar_lea.hbm %s0, %s188
          %s191 = sshll.u32 %s189, 4
          %s192 = int_to_ptr.hbm [resolvable:$true] %s191
          %s193 = sshll.u32 %s182, 4
          %s194 = int_to_ptr.vmem [resolvable:$true] %s193
          %196 = dma.hbm_to_vmem [thread:$0]  %s192, 256, %s194, %s179
        $region32: #{tpu_custom_call.1} parent=27 // pred_fallthru
          _
      $region28: #{tpu_custom_call.1} parent=5 // pred_fallthru
        _
      %p197 = scmp.le.s32.totalorder 1, %s16
      %p198 = scmp.lt.s32.totalorder %s16, 3
      %p199 = pnand %p197, %p198
      %p200 = pneg %p199
      // Predicated region
      $region33: #{tpu_custom_call.1} parent=5 // pred_check
        _
      $region34: #{tpu_custom_call.1} parent=5 // pred_check_branch
        %202 = sbr.rel (%p199) target = $region36
      $region35: #{tpu_custom_call.1} parent=5 // pred_region
        %s203 = ssub.s32 %s16, 1
        %s204 = sand.u32 %s43, 1
        %s205 = scalar_lea.sflag [#allocation3], %s204
        %s206 = sand.u32 %s43, 1
        %s207 = smul.addr %s206, 16
        %s208 = scalar_lea.vmem [#allocation2], %s207
        // Predicated region
        $region37: #{tpu_custom_call.1} parent=35 // pred_check
          %p209 = pneg %p56
        $region38: #{tpu_custom_call.1} parent=35 // pred_check_branch
          %211 = sbr.rel (%p209) target = $region40
        $region39: #{tpu_custom_call.1} parent=35 // pred_region
          %213 = dma.done %s205, 256
        $region40: #{tpu_custom_call.1} parent=35 // pred_fallthru
          _
        %s214 = sand.u32 %s43, 1
        %s215 = scalar_lea.sflag [#allocation3], %s214
        %s216 = sand.u32 %s43, 1
        %s217 = smul.addr %s216, 16
        %s218 = scalar_lea.vmem [#allocation2], %s217
        %p219 = pneg %p56
        %p220 = pneg %p53
        %p221 = pneg %p77
        %p222 = pneg %p74
        %p223 = pneg %p98
        %p224 = pneg %p95
        %p225 = pneg %p119
        %p226 = pneg %p116
        %p227 = pneg %p147
        %p228 = pneg %p144
        %s229 = sand.u32 %s134, 1
        %s230 = scalar_lea.sflag [#allocation4], %s229
        %s231 = sand.u32 %s134, 1
        %s232 = smul.addr %s231, 16
        %s233 = scalar_lea.vmem [#allocation5], %s232
        %s234 = smul.u32 2, %s26
        %s235 = smul.u32 2, %s26
        %v236 = vld [vmem:[%s1] sm:$0xff]
        %v237 = vld [vmem:[%s2] sm:$0xff]
        %v238 = vld [vmem:[%s3] sm:$0xff]
        %v239 = vld [vmem:[%s208] sm:$0xff]
        %v240 = vld [vmem:[%s208 + $0x8] sm:$0xff]
        %242 = vset.pattern.permute.xlu0 0
        %243 = vperm.xlu0 %242, %v236
        %v244 = vpop.permute.xlu0 %243
        %v246 = vmul.f32 %v239, %v244
        %v247 = vmul.f32 %v240, %v244
        %249 = vset.pattern.permute.xlu0 0
        %250 = vperm.xlu0 %249, %v237
        %v251 = vpop.permute.xlu0 %250
        %v253 = vadd.f32 %v246, %v251
        %v254 = vadd.f32 %v247, %v251
        %v255 = vmax.f32 %v253, 0.0
        %v256 = vmax.f32 %v254, 0.0
        %vm257 = vcmask 64512
        %v259 = vsel %vm257, %v238, 0
        %261 = vmatpush.msra.mxu0 0.0
        %262 = vmatpush.msra.mxu0 0.0
        %263 = vmatpush.msra.mxu0 0.0
        %264 = vmatpush.msra.mxu0 0.0
        %265 = vmatpush.msra.mxu0 0.0
        %266 = vmatpush.msra.mxu0 0.0
        %267 = vmatpush.msra.mxu0 0.0
        %268 = vmatpush.msra.mxu0 0.0
        %269 = vmatpush.msra.mxu0 0.0
        %270 = vmatpush.msra.mxu0 0.0
        %271 = vmatpush.msra.mxu0 0.0
        %272 = vmatpush.msra.mxu0 0.0
        %273 = vmatpush.msra.mxu0 0.0
        %274 = vmatpush.msra.mxu0 0.0
        %275 = vmatpush.msra.mxu0 0.0
        %276 = vmatpush.msra.mxu0 %v255
        %277 = vmatmul.f32.gmra.mxu0 %v259
        %v278 = vpop.f32.mrf.mxu0
        %v279 = vadd.f32 0.0, %v278
        %280 = vdwg.mxu0
        %281 = vmatpush.msra.mxu0 0.0
        %282 = vmatpush.msra.mxu0 0.0
        %283 = vmatpush.msra.mxu0 0.0
        %284 = vmatpush.msra.mxu0 0.0
        %285 = vmatpush.msra.mxu0 0.0
        %286 = vmatpush.msra.mxu0 0.0
        %287 = vmatpush.msra.mxu0 0.0
        %288 = vmatpush.msra.mxu0 0.0
        %289 = vmatpush.msra.mxu0 0.0
        %290 = vmatpush.msra.mxu0 0.0
        %291 = vmatpush.msra.mxu0 0.0
        %292 = vmatpush.msra.mxu0 0.0
        %293 = vmatpush.msra.mxu0 0.0
        %294 = vmatpush.msra.mxu0 0.0
        %295 = vmatpush.msra.mxu0 0.0
        %296 = vmatpush.msra.mxu0 %v256
        %297 = vmatmul.f32.gmra.mxu0 %v259
        %v298 = vpop.f32.mrf.mxu0
        %v299 = vadd.f32 0.0, %v298
        %300 = vdwg.mxu0
        %301 = vst [vmem:[%s233] sm:$0xff] %v279
        %302 = vst [vmem:[%s233 + $0x8] sm:$0xff] %v299
        %s303 = sand.u32 %s134, 1
        %s304 = scalar_lea.sflag [#allocation4], %s303
        %s305 = sand.u32 %s134, 1
        %s306 = smul.addr %s305, 16
        %s307 = scalar_lea.vmem [#allocation5], %s306
        // Predicated region
        $region41: #{tpu_custom_call.1} parent=35 // pred_check
          %p308 = pneg %p144
        $region42: #{tpu_custom_call.1} parent=35 // pred_check_branch
          %310 = sbr.rel (%p308) target = $region44
        $region43: #{tpu_custom_call.1} parent=35 // pred_region
          %s311 = smul.u32 2, %s26
          %313 = vsyncadd %s304, 0
          %s314 = smul.addr %s25, 2
          %s315 = sadd.s32 %s311, %s314
          %s316 = smul.addr %s315, 8
          %s317 = scalar_lea.hbm %s4, %s316
          %s319 = sshll.u32 %s307, 4
          %s320 = int_to_ptr.vmem [resolvable:$true] %s319
          %s321 = sshll.u32 %s317, 4
          %s322 = int_to_ptr.hbm [resolvable:$true] %s321
          %324 = dma.vmem_to_hbm [thread:$0]  %s320, 256, %s322, %s304
        $region44: #{tpu_custom_call.1} parent=35 // pred_fallthru
          _
      $region36: #{tpu_custom_call.1} parent=5 // pred_fallthru
        _
      %p325 = scmp.le.s32.totalorder 2, %s16
      // Predicated region
      $region45: #{tpu_custom_call.1} parent=5 // pred_check
        %p326 = pneg %p325
      $region46: #{tpu_custom_call.1} parent=5 // pred_check_branch
        %328 = sbr.rel (%p326) target = $region48
      $region47: #{tpu_custom_call.1} parent=5 // pred_region
        %s329 = ssub.s32 %s16, 2
        // Predicated region
        $region49: #{tpu_custom_call.1} parent=47 // pred_check
          %p330 = pneg %p150
        $region50: #{tpu_custom_call.1} parent=47 // pred_check_branch
          %332 = sbr.rel (%p330) target = $region52
        $region51: #{tpu_custom_call.1} parent=47 // pred_region
          %s333 = sand.u32 %s135, 1
          %s334 = scalar_lea.sflag [#allocation4], %s333
          %s335 = sand.u32 %s135, 1
          %s336 = smul.addr %s335, 16
          %s337 = scalar_lea.vmem [#allocation5], %s336
          %339 = dma.done %s334, 256
        $region52: #{tpu_custom_call.1} parent=47 // pred_fallthru
          _
      $region48: #{tpu_custom_call.1} parent=5 // pred_fallthru
        _
    $region6: #{tpu_custom_call.1} parent=1 // loop_footer
      %s20 = sadd.s32 1, %s16
    $region7: #{tpu_custom_call.1} parent=1 // loop_footer_branch
      %15 = sbr.rel target = $region3
    $region8: #{tpu_custom_call.1} parent=1 // loop_exit
      _
    %340 = vsyncpa [#allocation3], 1
    %s341 = scalar_lea.sflag [#allocation3], 1
    %342 = vsyncpa %s341, 1
    %343 = vsyncpa [#allocation4], 1
    %s344 = scalar_lea.sflag [#allocation4], 1
    %345 = vsyncpa %s344, 1

</llo_original>
